<compile_context>
chip_gen: v6e
topology: v6e:2x2x1
jax: 0.10.0
libtpu: 0.0.40
codegen_flags: <defaults>
</compile_context>

<pallas_src>
import jax
import jax.numpy as jnp
from jax.experimental import pallas as pl
from jax.experimental.pallas import tpu as pltpu

EPS = 1e-5

PREF_TILE_ROWS = 256           # multiple of 8
PREF_TILE_HW = 8192            # multiple of 512 (and of 128)
VMEM_LIMIT_BYTES = 48 * 1024 * 1024


def _round_up(x, m):
    return ((x + m - 1) // m) * m


def _largest_divisor_tile(dim, pref, align):
    """Largest multiple of `align` that divides `dim` (a multiple of `align`) and is <= pref."""
    t = min(pref, dim)
    t = max((t // align) * align, align)
    while dim % t != 0:
        t -= align
    return t


def _pick_hw_tiling(hw, pref):
    """Return (padded_hw, tile_hw): tile is a multiple of 128, >=512 when it helps,
    and divides padded_hw; padding waste is bounded (< 512 elements per row)."""
    hw128 = _round_up(hw, 128)
    t = _largest_divisor_tile(hw128, pref, 128)
    if t >= 512 or t == hw128:          # good divisor, or whole (small) row fits in one block
        return hw128, t
    # Awkward extent (best 128-aligned divisor is tiny): pad a little further and retile at 512.
    hw512 = _round_up(hw, 512)
    t = _largest_divisor_tile(hw512, pref, 512)
    return hw512, t


def _pick_row_tiling(nc, pref):
    """Return (padded_nc, tile_rows). Guarantees >= 2 row blocks (megacore) when nc allows."""
    nc8 = _round_up(nc, 8)
    t = _largest_divisor_tile(nc8, pref, 8)
    if nc8 // t < 2 and nc8 >= 16:
        half_pref = max(((nc8 // 2) // 8) * 8, 8)
        t = _largest_divisor_tile(nc8, half_pref, 8)
    return nc8, t


def _dice_rows_kernel(pred_ref, gt_ref, dice_ref, inter_acc, psum_acc, gsum_acc):
    """Per-row Dice with the H*W axis as a tiled ("arbitrary") reduction.

    pred_ref, gt_ref : (TILE_ROWS, TILE_HW) VMEM tiles (any float dtype)
    dice_ref         : (TILE_ROWS, 1)       VMEM tile  (float32)
    *_acc            : (TILE_ROWS, 128)     float32 VMEM scratch accumulators
    """
    j = pl.program_id(1)

    @pl.when(j == 0)
    def _():
        inter_acc[...] = jnp.zeros_like(inter_acc)
        psum_acc[...] = jnp.zeros_like(psum_acc)
        gsum_acc[...] = jnp.zeros_like(gsum_acc)

    pred = pred_ref[...].astype(jnp.float32)
    gt = gt_ref[...].astype(jnp.float32)
    tr, thw = pred.shape

    # Per-lane partial sums: split the lane axis into (lane-tiles, 128) and add the
    # lane-tiles together — pure VALU vreg adds, no per-step XLU lane reduce and no
    # lane-sparse masked stores.
    pred3 = pred.reshape(tr, thw // 128, 128)
    gt3 = gt.reshape(tr, thw // 128, 128)

    inter_acc[...] += jnp.sum(pred3 * gt3, axis=1)
    psum_acc[...] += jnp.sum(pred3, axis=1)
    gsum_acc[...] += jnp.sum(gt3, axis=1)

    @pl.when(j == pl.num_programs(1) - 1)
    def _():
        inter = jnp.sum(inter_acc[...], axis=-1, keepdims=True)
        psum = jnp.sum(psum_acc[...], axis=-1, keepdims=True)
        gsum = jnp.sum(gsum_acc[...], axis=-1, keepdims=True)
        dice_ref[...] = (inter + EPS) * 2.0 / (gsum + psum + EPS)


def dice_metric_pallas(pred, gt):
    """pred, gt: (N, C, H, W) -> dice per (n, c): (N, C) float32."""
    N, C, H, W = pred.shape
    NC, HW = N * C, H * W

    pred2 = pred.reshape(NC, HW)
    gt2 = gt.reshape(NC, HW)

    nc_pad, tile_rows = _pick_row_tiling(NC, PREF_TILE_ROWS)
    hw_pad, tile_hw = _pick_hw_tiling(HW, PREF_TILE_HW)

    # Zero padding is dice-neutral: zeros added to both pred and gt contribute
    # nothing to any of the three sums; padded rows are sliced off below.
    if nc_pad != NC or hw_pad != HW:
        pred2 = jnp.pad(pred2, ((0, nc_pad - NC), (0, hw_pad - HW)))
        gt2 = jnp.pad(gt2, ((0, nc_pad - NC), (0, hw_pad - HW)))

    grid = (nc_pad // tile_rows, hw_pad // tile_hw)

    dice = pl.pallas_call(
        _dice_rows_kernel,
        out_shape=jax.ShapeDtypeStruct((nc_pad, 1), jnp.float32),
        grid_spec=pltpu.PrefetchScalarGridSpec(
            num_scalar_prefetch=0,
            grid=grid,
            in_specs=[
                pl.BlockSpec((tile_rows, tile_hw), lambda i, j: (i, j)),
                pl.BlockSpec((tile_rows, tile_hw), lambda i, j: (i, j)),
            ],
            out_specs=pl.BlockSpec((tile_rows, 1), lambda i, j: (i, 0)),
            scratch_shapes=[
                pltpu.VMEM((tile_rows, 128), jnp.float32),
                pltpu.VMEM((tile_rows, 128), jnp.float32),
                pltpu.VMEM((tile_rows, 128), jnp.float32),
            ],
        ),
        compiler_params=pltpu.CompilerParams(
            dimension_semantics=("parallel", "arbitrary"),
            vmem_limit_bytes=VMEM_LIMIT_BYTES,
        ),
    )(pred2, gt2)

    return dice[:NC].reshape(N, C)


def dice_loss_pallas(pred, gt):
    """Matches DiceLoss().forward(pred, gt)."""
    # TODO(synk): for maximum HBM savings callers can pass pred as bf16 (and gt as
    # a low-precision mask); the kernel upcasts to f32 internally either way.
    dice = dice_metric_pallas(pred, gt)  # (N, C)
    return jnp.mean(1.0 - dice)


def _reference(pred, gt):
    """Pure-JAX reference mirroring the PyTorch code."""
    intersection = gt * pred
    dice = (intersection.sum(axis=(2, 3)) + EPS) * 2.0 / (
        gt.sum(axis=(2, 3)) + pred.sum(axis=(2, 3)) + EPS
    )
    return jnp.mean(1.0 - dice)


if __name__ == "__main__":
    key = jax.random.PRNGKey(0)
    k1, k2, k3, k4 = jax.random.split(key, 4)

    # NCHW, as the PyTorch module expects.
    N, C, H, W = 2, 4, 16, 16
    pred = jax.nn.sigmoid(jax.random.normal(k1, (N, C, H, W), dtype=jnp.float32))
    gt = (jax.random.uniform(k2, (N, C, H, W)) > 0.5).astype(jnp.float32)

    loss = jax.block_until_ready(dice_loss_pallas(pred, gt))
    ref = jax.block_until_ready(_reference(pred, gt))
    assert jnp.allclose(loss, ref, rtol=1e-5, atol=1e-5), (loss, ref)

    # bf16 streaming path (accumulation stays f32 in-kernel).
    loss_bf16 = jax.block_until_ready(
        dice_loss_pallas(pred.astype(jnp.bfloat16), gt.astype(jnp.bfloat16))
    )
    ref_bf16 = jax.block_until_ready(
        _reference(
            pred.astype(jnp.bfloat16).astype(jnp.float32),
            gt.astype(jnp.bfloat16).astype(jnp.float32),
        )
    )
    assert jnp.allclose(loss_bf16, ref_bf16, rtol=1e-3, atol=1e-3), (loss_bf16, ref_bf16)

    # Odd, non-128-aligned spatial shape exercises the zero-padding path.
    N2, C2, H2, W2 = 2, 3, 11, 13
    pred_odd = jax.nn.sigmoid(jax.random.normal(k3, (N2, C2, H2, W2), dtype=jnp.float32))
    gt_odd = (jax.random.uniform(k4, (N2, C2, H2, W2)) > 0.5).astype(jnp.float32)
    loss_odd = jax.block_until_ready(dice_loss_pallas(pred_odd, gt_odd))
    ref_odd = jax.block_until_ready(_reference(pred_odd, gt_odd))
    assert jnp.allclose(loss_odd, ref_odd, rtol=1e-5, atol=1e-5), (loss_odd, ref_odd)

    print("KERNEL_OK")
</pallas_src>

<mosaic_0001>
module attributes {stable_mosaic.version = 11 : i64} {
  func.func @_dice_rows_kernel(%arg0: i32, %arg1: i32, %arg2: memref<8x256xf32, #tpu.memory_space<vmem>>, %arg3: memref<8x256xf32, #tpu.memory_space<vmem>>, %arg4: memref<8x1xf32, #tpu.memory_space<vmem>>, %arg5: memref<8x128xf32, #tpu.memory_space<vmem>>, %arg6: memref<8x128xf32, #tpu.memory_space<vmem>>, %arg7: memref<8x128xf32, #tpu.memory_space<vmem>>) attributes {dimension_semantics = [#tpu.dimension_semantics<parallel>, #tpu.dimension_semantics<arbitrary>], iteration_bounds = array<i64: 1, 1>, scalar_prefetch = 0 : i64, scratch_operands = 3 : i64, tpu.core_type = #tpu.core_type<tc>, window_params = [{transform_indices = @transform_0, window_bounds = array<i64: 8, 256>}, {transform_indices = @transform_1, window_bounds = array<i64: 8, 256>}, {transform_indices = @transform_2, window_bounds = array<i64: 8, 1>}]} {
    %c0_i32 = arith.constant 0 : i32
    %0 = arith.cmpi eq, %arg1, %c0_i32 : i32
    %1 = arith.extui %0 : i1 to i32
    %c0_i32_0 = arith.constant 0 : i32
    %2 = arith.cmpi ne, %1, %c0_i32_0 : i32
    scf.if %2 {
      %cst_20 = arith.constant 0.000000e+00 : f32
      %23 = vector.broadcast %cst_20 : f32 to vector<8x128xf32>
      %c0_21 = arith.constant 0 : index
      %c0_22 = arith.constant 0 : index
      %24 = vector.load %arg5[%c0_21, %c0_22] : memref<8x128xf32, #tpu.memory_space<vmem>>, vector<8x128xf32>
      tpu.vector_store %arg5[%c0_21, %c0_22], %23 {strides = array<i32>} : memref<8x128xf32, #tpu.memory_space<vmem>>, vector<8x128xf32>,
      %cst_23 = arith.constant 0.000000e+00 : f32
      %25 = vector.broadcast %cst_23 : f32 to vector<8x128xf32>
      %c0_24 = arith.constant 0 : index
      %c0_25 = arith.constant 0 : index
      %26 = vector.load %arg6[%c0_24, %c0_25] : memref<8x128xf32, #tpu.memory_space<vmem>>, vector<8x128xf32>
      tpu.vector_store %arg6[%c0_24, %c0_25], %25 {strides = array<i32>} : memref<8x128xf32, #tpu.memory_space<vmem>>, vector<8x128xf32>,
      %cst_26 = arith.constant 0.000000e+00 : f32
      %27 = vector.broadcast %cst_26 : f32 to vector<8x128xf32>
      %c0_27 = arith.constant 0 : index
      %c0_28 = arith.constant 0 : index
      %28 = vector.load %arg7[%c0_27, %c0_28] : memref<8x128xf32, #tpu.memory_space<vmem>>, vector<8x128xf32>
      tpu.vector_store %arg7[%c0_27, %c0_28], %27 {strides = array<i32>} : memref<8x128xf32, #tpu.memory_space<vmem>>, vector<8x128xf32>,
    } else {
    }
    %c0 = arith.constant 0 : index
    %c0_1 = arith.constant 0 : index
    %3 = vector.load %arg2[%c0, %c0_1] : memref<8x256xf32, #tpu.memory_space<vmem>>, vector<8x256xf32>
    %c0_2 = arith.constant 0 : index
    %c0_3 = arith.constant 0 : index
    %4 = vector.load %arg3[%c0_2, %c0_3] : memref<8x256xf32, #tpu.memory_space<vmem>>, vector<8x256xf32>
    %5 = vector.shape_cast %3 : vector<8x256xf32> to vector<8x2x128xf32>
    %6 = vector.shape_cast %4 : vector<8x256xf32> to vector<8x2x128xf32>
    %c0_4 = arith.constant 0 : index
    %c0_5 = arith.constant 0 : index
    %7 = vector.load %arg5[%c0_4, %c0_5] : memref<8x128xf32, #tpu.memory_space<vmem>>, vector<8x128xf32>
    %8 = arith.mulf %5, %6 : vector<8x2x128xf32>
    %cst = arith.constant dense<0.000000e+00> : vector<8x128xf32>
    %9 = vector.multi_reduction <add>, %8, %cst [1] : vector<8x2x128xf32> to vector<8x128xf32>
    %10 = arith.addf %7, %9 : vector<8x128xf32>
    %c0_6 = arith.constant 0 : index
    %c0_7 = arith.constant 0 : index
    %11 = vector.load %arg5[%c0_6, %c0_7] : memref<8x128xf32, #tpu.memory_space<vmem>>, vector<8x128xf32>
    tpu.vector_store %arg5[%c0_6, %c0_7], %10 {strides = array<i32>} : memref<8x128xf32, #tpu.memory_space<vmem>>, vector<8x128xf32>,
    %c0_8 = arith.constant 0 : index
    %c0_9 = arith.constant 0 : index
    %12 = vector.load %arg6[%c0_8, %c0_9] : memref<8x128xf32, #tpu.memory_space<vmem>>, vector<8x128xf32>
    %cst_10 = arith.constant dense<0.000000e+00> : vector<8x128xf32>
    %13 = vector.multi_reduction <add>, %5, %cst_10 [1] : vector<8x2x128xf32> to vector<8x128xf32>
    %14 = arith.addf %12, %13 : vector<8x128xf32>
    %c0_11 = arith.constant 0 : index
    %c0_12 = arith.constant 0 : index
    %15 = vector.load %arg6[%c0_11, %c0_12] : memref<8x128xf32, #tpu.memory_space<vmem>>, vector<8x128xf32>
    tpu.vector_store %arg6[%c0_11, %c0_12], %14 {strides = array<i32>} : memref<8x128xf32, #tpu.memory_space<vmem>>, vector<8x128xf32>,
    %c0_13 = arith.constant 0 : index
    %c0_14 = arith.constant 0 : index
    %16 = vector.load %arg7[%c0_13, %c0_14] : memref<8x128xf32, #tpu.memory_space<vmem>>, vector<8x128xf32>
    %cst_15 = arith.constant dense<0.000000e+00> : vector<8x128xf32>
    %17 = vector.multi_reduction <add>, %6, %cst_15 [1] : vector<8x2x128xf32> to vector<8x128xf32>
    %18 = arith.addf %16, %17 : vector<8x128xf32>
    %c0_16 = arith.constant 0 : index
    %c0_17 = arith.constant 0 : index
    %19 = vector.load %arg7[%c0_16, %c0_17] : memref<8x128xf32, #tpu.memory_space<vmem>>, vector<8x128xf32>
    tpu.vector_store %arg7[%c0_16, %c0_17], %18 {strides = array<i32>} : memref<8x128xf32, #tpu.memory_space<vmem>>, vector<8x128xf32>,
    %c0_i32_18 = arith.constant 0 : i32
    %20 = arith.cmpi eq, %arg1, %c0_i32_18 : i32
    %21 = arith.extui %20 : i1 to i32
    %c0_i32_19 = arith.constant 0 : i32
    %22 = arith.cmpi ne, %21, %c0_i32_19 : i32
    scf.if %22 {
      %c0_20 = arith.constant 0 : index
      %c0_21 = arith.constant 0 : index
      %23 = vector.load %arg5[%c0_20, %c0_21] : memref<8x128xf32, #tpu.memory_space<vmem>>, vector<8x128xf32>
      %cst_22 = arith.constant dense<0.000000e+00> : vector<8xf32>
      %24 = vector.multi_reduction <add>, %23, %cst_22 [1] : vector<8x128xf32> to vector<8xf32>
      %25 = vector.shape_cast %24 : vector<8xf32> to vector<8x1xf32>
      %c0_23 = arith.constant 0 : index
      %c0_24 = arith.constant 0 : index
      %26 = vector.load %arg6[%c0_23, %c0_24] : memref<8x128xf32, #tpu.memory_space<vmem>>, vector<8x128xf32>
      %cst_25 = arith.constant dense<0.000000e+00> : vector<8xf32>
      %27 = vector.multi_reduction <add>, %26, %cst_25 [1] : vector<8x128xf32> to vector<8xf32>
      %28 = vector.shape_cast %27 : vector<8xf32> to vector<8x1xf32>
      %c0_26 = arith.constant 0 : index
      %c0_27 = arith.constant 0 : index
      %29 = vector.load %arg7[%c0_26, %c0_27] : memref<8x128xf32, #tpu.memory_space<vmem>>, vector<8x128xf32>
      %cst_28 = arith.constant dense<0.000000e+00> : vector<8xf32>
      %30 = vector.multi_reduction <add>, %29, %cst_28 [1] : vector<8x128xf32> to vector<8xf32>
      %31 = vector.shape_cast %30 : vector<8xf32> to vector<8x1xf32>
      %cst_29 = arith.constant 9.99999974E-6 : f32
      %32 = vector.broadcast %cst_29 : f32 to vector<8x1xf32>
      %33 = arith.addf %25, %32 : vector<8x1xf32>
      %cst_30 = arith.constant 2.000000e+00 : f32
      %34 = vector.broadcast %cst_30 : f32 to vector<8x1xf32>
      %35 = arith.mulf %33, %34 : vector<8x1xf32>
      %36 = arith.addf %31, %28 : vector<8x1xf32>
      %cst_31 = arith.constant 9.99999974E-6 : f32
      %37 = vector.broadcast %cst_31 : f32 to vector<8x1xf32>
      %38 = arith.addf %36, %37 : vector<8x1xf32>
      %39 = arith.divf %35, %38 : vector<8x1xf32>
      %c0_32 = arith.constant 0 : index
      %c0_33 = arith.constant 0 : index
      %40 = vector.load %arg4[%c0_32, %c0_33] : memref<8x1xf32, #tpu.memory_space<vmem>>, vector<8x1xf32>
      tpu.vector_store %arg4[%c0_32, %c0_33], %39 {strides = array<i32>} : memref<8x1xf32, #tpu.memory_space<vmem>>, vector<8x1xf32>,
    } else {
    }
    return
  }
  func.func @transform_0(%arg0: i32, %arg1: i32) -> (i32, i32) {
    %c0_i32 = arith.constant 0 : i32
    return %arg0, %arg1 : i32, i32
  }
  func.func @transform_1(%arg0: i32, %arg1: i32) -> (i32, i32) {
    %c0_i32 = arith.constant 0 : i32
    return %arg0, %arg1 : i32, i32
  }
  func.func @transform_2(%arg0: i32, %arg1: i32) -> (i32, i32) {
    %c0_i32 = arith.constant 0 : i32
    %c0_i32_0 = arith.constant 0 : i32
    return %arg0, %c0_i32 : i32, i32
  }
}

</mosaic_0001>

<llo_original>
// kernel: tpu_custom_call.1
$region0: #{tpu_custom_call.1}
  #allocation0 [shape = 'u32[]', space=smem, size = 0x4, offset = 0x4, fixed_abs, tag = 'smem constant byte address 0x4 - core index']
  #allocation1 [shape = 'u32[144,128]{1,0:T(1,128)}', space=vmem, size = 0x12000, scoped, tag = 'internal scratch']
  #allocation2 [shape = 'f32[8,128]{1,0:T(8,128)}', space=vmem, size = 0x1000, scoped, tag = 'scratch operand']
  #allocation3 [shape = 'f32[8,128]{1,0:T(8,128)}', space=vmem, size = 0x1000, scoped, tag = 'scratch operand']
  #allocation4 [shape = 'f32[8,128]{1,0:T(8,128)}', space=vmem, size = 0x1000, scoped, tag = 'scratch operand']
  %s0 = inlined_call_operand.hbm [shape: f32[8,256], index: 0, kind: input, shape index: {}]
  %s1 = inlined_call_operand.hbm [shape: f32[8,256], index: 1, kind: input, shape index: {}]
  %s2 = inlined_call_operand.vmem [shape: f32[8,1], index: 2, kind: output, shape index: {}]
  %s3 = sld [smem:[#allocation0]]
  $region34: #{tpu_custom_call.1} parent=0
    _
  %s5 = ssub.s32 1, %s3
  %s6 = scalar_select 0, %s5, %s3
  $region1: #{tpu_custom_call.1} parent=0
    #allocation5 [shape = 'u8[8192]{0}', space=vmem, size = 0x2000, scoped, tag = 'input window, operand 0, single buffered']
    #allocation6 [shape = 's32[1]{0}', space=sflag, size = 0x4, scoped, tag = 'scoped memory for tpu_custom_call.1']
    #allocation7 [shape = 'u8[8192]{0}', space=vmem, size = 0x2000, scoped, tag = 'input window, operand 1, single buffered']
    #allocation8 [shape = 's32[1]{0}', space=sflag, size = 0x4, scoped, tag = 'scoped memory for tpu_custom_call.1']
    %7 = vsyncpa [#allocation6], 0
    %8 = vsyncpa [#allocation8], 0
    // Predicated region
    $region2: #{tpu_custom_call.1} parent=1 // pred_check
      _
    $region3: #{tpu_custom_call.1} parent=1 // pred_check_branch
      %10 = sbr.rel (0) target = $region5
    $region4: #{tpu_custom_call.1} parent=1 // pred_region
      %s12 = ssub.s32 256, 256
      %13 = vsyncadd [#allocation6], %s12
      %s15 = sshll.u32 [#allocation5], 4
      %s16 = int_to_ptr.vmem [resolvable:$true] %s15
      %18 = dma.hbm_to_vmem [thread:$0]  %s0, 256, %s16, [#allocation6]
    $region5: #{tpu_custom_call.1} parent=1 // pred_fallthru
      _
    // Predicated region
    $region6: #{tpu_custom_call.1} parent=1 // pred_check
      _
    $region7: #{tpu_custom_call.1} parent=1 // pred_check_branch
      %20 = sbr.rel (0) target = $region9
    $region8: #{tpu_custom_call.1} parent=1 // pred_region
      %s22 = ssub.s32 256, 256
      %23 = vsyncadd [#allocation8], %s22
      %s25 = sshll.u32 [#allocation7], 4
      %s26 = int_to_ptr.vmem [resolvable:$true] %s25
      %28 = dma.hbm_to_vmem [thread:$0]  %s1, 256, %s26, [#allocation8]
    $region9: #{tpu_custom_call.1} parent=1 // pred_fallthru
      _
    // Predicated region
    $region10: #{tpu_custom_call.1} parent=1 // pred_check
      _
    $region11: #{tpu_custom_call.1} parent=1 // pred_check_branch
      %30 = sbr.rel (0) target = $region13
    $region12: #{tpu_custom_call.1} parent=1 // pred_region
      %31 = dma.done [#allocation6], 256
    $region13: #{tpu_custom_call.1} parent=1 // pred_fallthru
      _
    // Predicated region
    $region14: #{tpu_custom_call.1} parent=1 // pred_check
      _
    $region15: #{tpu_custom_call.1} parent=1 // pred_check_branch
      %33 = sbr.rel (0) target = $region17
    $region16: #{tpu_custom_call.1} parent=1 // pred_region
      %34 = dma.done [#allocation8], 256
    $region17: #{tpu_custom_call.1} parent=1 // pred_fallthru
      _
    %p35 = scmp.eq.s32.totalorder 0, 0
    // Predicated region
    $region18: #{tpu_custom_call.1} parent=1 // pred_check
      %p36 = pneg %p35
    $region19: #{tpu_custom_call.1} parent=1 // pred_check_branch
      %38 = sbr.rel (%p36) target = $region21
    $region20: #{tpu_custom_call.1} parent=1 // pred_region
      %39 = vst [vmem:[#allocation2] sm:$0xff] 0.0
      %40 = vst [vmem:[#allocation3] sm:$0xff] 0.0
      %41 = vst [vmem:[#allocation4] sm:$0xff] 0.0
    $region21: #{tpu_custom_call.1} parent=1 // pred_fallthru
      _
    %v42 = vld [vmem:[#allocation5] sm:$0xff]
    %v43 = vld [vmem:[#allocation5 + $0x8] sm:$0xff]
    %v44 = vld [vmem:[#allocation7] sm:$0xff]
    %v45 = vld [vmem:[#allocation7 + $0x8] sm:$0xff]
    %v46 = vcombine.high %v42, 0.0
    %v48 = vunpack.c.l.s4 1983009808
    %v49 = vunpack.c.0.s8 %v48
    %v50 = vlaneseq
    %v51 = vshrl.u32 %v50, 7
    %v52 = vsub.s32 %v49, %v51
    %v53 = vrot.slane %v42, %v52
    %v55 = vunpack.c.l.s4 1983009808
    %v56 = vunpack.c.0.s8 %v55
    %v57 = vlaneseq
    %v58 = vshrl.u32 %v57, 7
    %v59 = vsub.s32 %v56, %v58
    %v60 = vrot.slane %v46, %v59
    %v61 = vcombine.high %v43, 0.0
    %v63 = vunpack.c.l.s4 1983009808
    %v64 = vunpack.c.0.s8 %v63
    %v65 = vlaneseq
    %v66 = vshrl.u32 %v65, 7
    %v67 = vsub.s32 %v64, %v66
    %v68 = vrot.slane %v43, %v67
    %v70 = vunpack.c.l.s4 1983009808
    %v71 = vunpack.c.0.s8 %v70
    %v72 = vlaneseq
    %v73 = vshrl.u32 %v72, 7
    %v74 = vsub.s32 %v71, %v73
    %v75 = vrot.slane %v61, %v74
    %v76 = vcombine.low %v53, %v68
    %v77 = vcombine.high %v53, %v68
    %v79 = vunpack.c.l.s4 1934713408
    %v80 = vunpack.c.0.s8 %v79
    %v81 = vlaneseq
    %v82 = vshrl.u32 %v81, 7
    %v83 = vsub.s32 %v80, %v82
    %v84 = vrot.slane %v76, %v83
    %v86 = vunpack.c.l.s4 1934713408
    %v87 = vunpack.c.0.s8 %v86
    %v88 = vlaneseq
    %v89 = vshrl.u32 %v88, 7
    %v90 = vsub.s32 %v87, %v89
    %v91 = vrot.slane %v77, %v90
    %v92 = vcombine.low %v60, %v75
    %v93 = vcombine.high %v60, %v75
    %v95 = vunpack.c.l.s4 1934713408
    %v96 = vunpack.c.0.s8 %v95
    %v97 = vlaneseq
    %v98 = vshrl.u32 %v97, 7
    %v99 = vsub.s32 %v96, %v98
    %v100 = vrot.slane %v92, %v99
    %v102 = vunpack.c.l.s4 1934713408
    %v103 = vunpack.c.0.s8 %v102
    %v104 = vlaneseq
    %v105 = vshrl.u32 %v104, 7
    %v106 = vsub.s32 %v103, %v105
    %v107 = vrot.slane %v93, %v106
    %v108 = vcombine.high %v84, 0.0
    %v109 = vcombine.high %v91, 0.0
    %v110 = vcombine.high %v100, 0.0
    %v111 = vcombine.high %v107, 0.0
    %v112 = vcombine.high %v44, 0.0
    %v114 = vunpack.c.l.s4 1983009808
    %v115 = vunpack.c.0.s8 %v114
    %v116 = vlaneseq
    %v117 = vshrl.u32 %v116, 7
    %v118 = vsub.s32 %v115, %v117
    %v119 = vrot.slane %v44, %v118
    %v121 = vunpack.c.l.s4 1983009808
    %v122 = vunpack.c.0.s8 %v121
    %v123 = vlaneseq
    %v124 = vshrl.u32 %v123, 7
    %v125 = vsub.s32 %v122, %v124
    %v126 = vrot.slane %v112, %v125
    %v127 = vcombine.high %v45, 0.0
    %v129 = vunpack.c.l.s4 1983009808
    %v130 = vunpack.c.0.s8 %v129
    %v131 = vlaneseq
    %v132 = vshrl.u32 %v131, 7
    %v133 = vsub.s32 %v130, %v132
    %v134 = vrot.slane %v45, %v133
    %v136 = vunpack.c.l.s4 1983009808
    %v137 = vunpack.c.0.s8 %v136
    %v138 = vlaneseq
    %v139 = vshrl.u32 %v138, 7
    %v140 = vsub.s32 %v137, %v139
    %v141 = vrot.slane %v127, %v140
    %v142 = vcombine.low %v119, %v134
    %v143 = vcombine.high %v119, %v134
    %v145 = vunpack.c.l.s4 1934713408
    %v146 = vunpack.c.0.s8 %v145
    %v147 = vlaneseq
    %v148 = vshrl.u32 %v147, 7
    %v149 = vsub.s32 %v146, %v148
    %v150 = vrot.slane %v142, %v149
    %v152 = vunpack.c.l.s4 1934713408
    %v153 = vunpack.c.0.s8 %v152
    %v154 = vlaneseq
    %v155 = vshrl.u32 %v154, 7
    %v156 = vsub.s32 %v153, %v155
    %v157 = vrot.slane %v143, %v156
    %v158 = vcombine.low %v126, %v141
    %v159 = vcombine.high %v126, %v141
    %v161 = vunpack.c.l.s4 1934713408
    %v162 = vunpack.c.0.s8 %v161
    %v163 = vlaneseq
    %v164 = vshrl.u32 %v163, 7
    %v165 = vsub.s32 %v162, %v164
    %v166 = vrot.slane %v158, %v165
    %v168 = vunpack.c.l.s4 1934713408
    %v169 = vunpack.c.0.s8 %v168
    %v170 = vlaneseq
    %v171 = vshrl.u32 %v170, 7
    %v172 = vsub.s32 %v169, %v171
    %v173 = vrot.slane %v159, %v172
    %v174 = vcombine.high %v150, 0.0
    %v175 = vcombine.high %v157, 0.0
    %v176 = vcombine.high %v166, 0.0
    %v177 = vcombine.high %v173, 0.0
    %v178 = vld [vmem:[#allocation2] sm:$0xff]
    %v179 = vmul.f32 %v84, %v150
    %v180 = vmul.f32 %v108, %v174
    %v181 = vmul.f32 %v91, %v157
    %v182 = vmul.f32 %v109, %v175
    %v183 = vmul.f32 %v100, %v166
    %v184 = vmul.f32 %v110, %v176
    %v185 = vmul.f32 %v107, %v173
    %v186 = vmul.f32 %v111, %v177
    %vm187 = vcmask 1041408
    %v188 = vsel %vm187, %v179, 0.0
    %v189 = vrot.slane %v188, 4
    %v190 = vadd.f32 %v188, %v189
    %v191 = vrot.slane %v190, 2
    %v192 = vadd.f32 %v190, %v191
    %v193 = vrot.slane %v192, 1
    %v194 = vadd.f32 %v192, %v193
    %v195 = vsel %vm187, %v180, 0.0
    %v196 = vrot.slane %v195, 4
    %v197 = vadd.f32 %v195, %v196
    %v198 = vrot.slane %v197, 2
    %v199 = vadd.f32 %v197, %v198
    %v200 = vrot.slane %v199, 1
    %v201 = vadd.f32 %v199, %v200
    %v202 = vsel %vm187, %v181, 0.0
    %v203 = vrot.slane %v202, 4
    %v204 = vadd.f32 %v202, %v203
    %v205 = vrot.slane %v204, 2
    %v206 = vadd.f32 %v204, %v205
    %v207 = vrot.slane %v206, 1
    %v208 = vadd.f32 %v206, %v207
    %v209 = vsel %vm187, %v182, 0.0
    %v210 = vrot.slane %v209, 4
    %v211 = vadd.f32 %v209, %v210
    %v212 = vrot.slane %v211, 2
    %v213 = vadd.f32 %v211, %v212
    %v214 = vrot.slane %v213, 1
    %v215 = vadd.f32 %v213, %v214
    %v216 = vsel %vm187, %v183, 0.0
    %v217 = vrot.slane %v216, 4
    %v218 = vadd.f32 %v216, %v217
    %v219 = vrot.slane %v218, 2
    %v220 = vadd.f32 %v218, %v219
    %v221 = vrot.slane %v220, 1
    %v222 = vadd.f32 %v220, %v221
    %v223 = vsel %vm187, %v184, 0.0
    %v224 = vrot.slane %v223, 4
    %v225 = vadd.f32 %v223, %v224
    %v226 = vrot.slane %v225, 2
    %v227 = vadd.f32 %v225, %v226
    %v228 = vrot.slane %v227, 1
    %v229 = vadd.f32 %v227, %v228
    %v230 = vsel %vm187, %v185, 0.0
    %v231 = vrot.slane %v230, 4
    %v232 = vadd.f32 %v230, %v231
    %v233 = vrot.slane %v232, 2
    %v234 = vadd.f32 %v232, %v233
    %v235 = vrot.slane %v234, 1
    %v236 = vadd.f32 %v234, %v235
    %v237 = vsel %vm187, %v186, 0.0
    %v238 = vrot.slane %v237, 4
    %v239 = vadd.f32 %v237, %v238
    %v240 = vrot.slane %v239, 2
    %v241 = vadd.f32 %v239, %v240
    %v242 = vrot.slane %v241, 1
    %v243 = vadd.f32 %v241, %v242
    %vm252 = vcmask 1041409
    %v253 = vsel %vm252, %v201, %v194
    %vm254 = vcmask 1042434
    %v255 = vsel %vm254, %v208, %v253
    %vm256 = vcmask 1043459
    %v257 = vsel %vm256, %v215, %v255
    %vm258 = vcmask 1044484
    %v259 = vsel %vm258, %v222, %v257
    %vm260 = vcmask 1045509
    %v261 = vsel %vm260, %v229, %v259
    %vm262 = vcmask 1046534
    %v263 = vsel %vm262, %v236, %v261
    %vm264 = vcmask 1047559
    %v265 = vsel %vm264, %v243, %v263
    %v267 = vadd.f32 %v178, %v265
    %268 = vst [vmem:[#allocation2] sm:$0xff] %v267
    %v269 = vld [vmem:[#allocation3] sm:$0xff]
    %v270 = vsel %vm187, %v84, 0.0
    %v271 = vrot.slane %v270, 4
    %v272 = vadd.f32 %v270, %v271
    %v273 = vrot.slane %v272, 2
    %v274 = vadd.f32 %v272, %v273
    %v275 = vrot.slane %v274, 1
    %v276 = vadd.f32 %v274, %v275
    %v277 = vsel %vm187, %v108, 0.0
    %v278 = vrot.slane %v277, 4
    %v279 = vadd.f32 %v277, %v278
    %v280 = vrot.slane %v279, 2
    %v281 = vadd.f32 %v279, %v280
    %v282 = vrot.slane %v281, 1
    %v283 = vadd.f32 %v281, %v282
    %v284 = vsel %vm187, %v91, 0.0
    %v285 = vrot.slane %v284, 4
    %v286 = vadd.f32 %v284, %v285
    %v287 = vrot.slane %v286, 2
    %v288 = vadd.f32 %v286, %v287
    %v289 = vrot.slane %v288, 1
    %v290 = vadd.f32 %v288, %v289
    %v291 = vsel %vm187, %v109, 0.0
    %v292 = vrot.slane %v291, 4
    %v293 = vadd.f32 %v291, %v292
    %v294 = vrot.slane %v293, 2
    %v295 = vadd.f32 %v293, %v294
    %v296 = vrot.slane %v295, 1
    %v297 = vadd.f32 %v295, %v296
    %v298 = vsel %vm187, %v100, 0.0
    %v299 = vrot.slane %v298, 4
    %v300 = vadd.f32 %v298, %v299
    %v301 = vrot.slane %v300, 2
    %v302 = vadd.f32 %v300, %v301
    %v303 = vrot.slane %v302, 1
    %v304 = vadd.f32 %v302, %v303
    %v305 = vsel %vm187, %v110, 0.0
    %v306 = vrot.slane %v305, 4
    %v307 = vadd.f32 %v305, %v306
    %v308 = vrot.slane %v307, 2
    %v309 = vadd.f32 %v307, %v308
    %v310 = vrot.slane %v309, 1
    %v311 = vadd.f32 %v309, %v310
    %v312 = vsel %vm187, %v107, 0.0
    %v313 = vrot.slane %v312, 4
    %v314 = vadd.f32 %v312, %v313
    %v315 = vrot.slane %v314, 2
    %v316 = vadd.f32 %v314, %v315
    %v317 = vrot.slane %v316, 1
    %v318 = vadd.f32 %v316, %v317
    %v319 = vsel %vm187, %v111, 0.0
    %v320 = vrot.slane %v319, 4
    %v321 = vadd.f32 %v319, %v320
    %v322 = vrot.slane %v321, 2
    %v323 = vadd.f32 %v321, %v322
    %v324 = vrot.slane %v323, 1
    %v325 = vadd.f32 %v323, %v324
    %v334 = vsel %vm252, %v283, %v276
    %v335 = vsel %vm254, %v290, %v334
    %v336 = vsel %vm256, %v297, %v335
    %v337 = vsel %vm258, %v304, %v336
    %v338 = vsel %vm260, %v311, %v337
    %v339 = vsel %vm262, %v318, %v338
    %v340 = vsel %vm264, %v325, %v339
    %v342 = vadd.f32 %v269, %v340
    %343 = vst [vmem:[#allocation3] sm:$0xff] %v342
    %v344 = vld [vmem:[#allocation4] sm:$0xff]
    %v345 = vsel %vm187, %v150, 0.0
    %v346 = vrot.slane %v345, 4
    %v347 = vadd.f32 %v345, %v346
    %v348 = vrot.slane %v347, 2
    %v349 = vadd.f32 %v347, %v348
    %v350 = vrot.slane %v349, 1
    %v351 = vadd.f32 %v349, %v350
    %v352 = vsel %vm187, %v174, 0.0
    %v353 = vrot.slane %v352, 4
    %v354 = vadd.f32 %v352, %v353
    %v355 = vrot.slane %v354, 2
    %v356 = vadd.f32 %v354, %v355
    %v357 = vrot.slane %v356, 1
    %v358 = vadd.f32 %v356, %v357
    %v359 = vsel %vm187, %v157, 0.0
    %v360 = vrot.slane %v359, 4
    %v361 = vadd.f32 %v359, %v360
    %v362 = vrot.slane %v361, 2
    %v363 = vadd.f32 %v361, %v362
    %v364 = vrot.slane %v363, 1
    %v365 = vadd.f32 %v363, %v364
    %v366 = vsel %vm187, %v175, 0.0
    %v367 = vrot.slane %v366, 4
    %v368 = vadd.f32 %v366, %v367
    %v369 = vrot.slane %v368, 2
    %v370 = vadd.f32 %v368, %v369
    %v371 = vrot.slane %v370, 1
    %v372 = vadd.f32 %v370, %v371
    %v373 = vsel %vm187, %v166, 0.0
    %v374 = vrot.slane %v373, 4
    %v375 = vadd.f32 %v373, %v374
    %v376 = vrot.slane %v375, 2
    %v377 = vadd.f32 %v375, %v376
    %v378 = vrot.slane %v377, 1
    %v379 = vadd.f32 %v377, %v378
    %v380 = vsel %vm187, %v176, 0.0
    %v381 = vrot.slane %v380, 4
    %v382 = vadd.f32 %v380, %v381
    %v383 = vrot.slane %v382, 2
    %v384 = vadd.f32 %v382, %v383
    %v385 = vrot.slane %v384, 1
    %v386 = vadd.f32 %v384, %v385
    %v387 = vsel %vm187, %v173, 0.0
    %v388 = vrot.slane %v387, 4
    %v389 = vadd.f32 %v387, %v388
    %v390 = vrot.slane %v389, 2
    %v391 = vadd.f32 %v389, %v390
    %v392 = vrot.slane %v391, 1
    %v393 = vadd.f32 %v391, %v392
    %v394 = vsel %vm187, %v177, 0.0
    %v395 = vrot.slane %v394, 4
    %v396 = vadd.f32 %v394, %v395
    %v397 = vrot.slane %v396, 2
    %v398 = vadd.f32 %v396, %v397
    %v399 = vrot.slane %v398, 1
    %v400 = vadd.f32 %v398, %v399
    %v409 = vsel %vm252, %v358, %v351
    %v410 = vsel %vm254, %v365, %v409
    %v411 = vsel %vm256, %v372, %v410
    %v412 = vsel %vm258, %v379, %v411
    %v413 = vsel %vm260, %v386, %v412
    %v414 = vsel %vm262, %v393, %v413
    %v415 = vsel %vm264, %v400, %v414
    %v417 = vadd.f32 %v344, %v415
    %418 = vst [vmem:[#allocation4] sm:$0xff] %v417
    // Predicated region
    $region22: #{tpu_custom_call.1} parent=1 // pred_check
      %p419 = pneg %p35
    $region23: #{tpu_custom_call.1} parent=1 // pred_check_branch
      %421 = sbr.rel (%p419) target = $region25
    $region24: #{tpu_custom_call.1} parent=1 // pred_region
      %v422 = vld [vmem:[#allocation2] sm:$0xff]
      %423 = vadd.xlane.f32.xlu0 %v422
      %v424 = vpop.xlane.xlu0 %423
      %v425 = vld [vmem:[#allocation3] sm:$0xff]
      %426 = vadd.xlane.f32.xlu0 %v425
      %v427 = vpop.xlane.xlu0 %426
      %v428 = vld [vmem:[#allocation4] sm:$0xff]
      %429 = vadd.xlane.f32.xlu0 %v428
      %v430 = vpop.xlane.xlu0 %429
      %v431 = vadd.f32 %v424, 1e-05
      %v432 = vmul.f32 %v431, 2.0
      %v433 = vadd.f32 %v430, %v427
      %v434 = vadd.f32 %v433, 1e-05
      %v435 = vrcp.pop %v434
      %v436 = vmul.f32 %v432, %v435
      %vm437 = vcmask 7168
      %438 = vst.msk [vmem:[%s2] sm:$0xff] %vm437, %v436
    $region25: #{tpu_custom_call.1} parent=1 // pred_fallthru
      _
    // Predicated region
    $region26: #{tpu_custom_call.1} parent=1 // pred_check
      _
    $region27: #{tpu_custom_call.1} parent=1 // pred_check_branch
      %440 = sbr.rel (0) target = $region29
    $region28: #{tpu_custom_call.1} parent=1 // pred_region
      _
    $region29: #{tpu_custom_call.1} parent=1 // pred_fallthru
      _
    // Predicated region
    $region30: #{tpu_custom_call.1} parent=1 // pred_check
      _
    $region31: #{tpu_custom_call.1} parent=1 // pred_check_branch
      %442 = sbr.rel (0) target = $region33
    $region32: #{tpu_custom_call.1} parent=1 // pred_region
      _
    $region33: #{tpu_custom_call.1} parent=1 // pred_fallthru
      _
    %443 = vsyncpa [#allocation6], 1
    %444 = vsyncpa [#allocation8], 1

</llo_original>
